<compile_context>
chip_gen: v5e
topology: v5e:2x2
jax: 0.10.0
libtpu: 0.0.40
codegen_flags: <defaults>
</compile_context>

<pallas_src>
import functools

import jax
import jax.numpy as jnp
from jax import lax
from jax.experimental import pallas as pl
from jax.experimental.pallas import tpu as pltpu

N_CHANNELS_OUT = 8


# ---------------------------------------------------------------- kernel ----

def _fused_cnn_kernel(p_ref, wc_ref, wfc_ref, b_ref, o_ref, flat_ref, *,
                      n_chan_out, n_pool):
    """conv(im2col matmul) -> ReLU -> 2x2 maxpool -> flatten -> Linear.

    One batch sample per grid step; everything stays in VMEM.

    p_ref   : [1, C*KH*KW, 4*n_pool] bf16  im2col patches, columns ordered
              (quadrant q = dh*2+dw, pooled position p = oh2*OW2 + ow2)
    wc_ref  : [Cout, C*KH*KW]        bf16  conv weight (torch OIHW reshaped)
    wfc_ref : [Cout*n_pool, n_cls]   bf16  fc weight (torch Linear.weight.T)
    b_ref   : [1, n_cls]             f32
    o_ref   : [1, 1, n_cls]          f32
    flat_ref: VMEM scratch [1, Cout*n_pool] f32
    """
    # Conv as one MXU matmul (bf16 inputs, f32 accumulation), channel-major
    # output so the lane axis is 4*n_pool (=144) wide instead of Cout (=8).
    conv = jnp.maximum(
        jnp.dot(wc_ref[...], p_ref[0], preferred_element_type=jnp.float32),
        0.0)                                              # [Cout, 4*n_pool] f32

    # MaxPool2d(2): columns are (quadrant, pooled-pos), so the 2x2 window max
    # is an elementwise max over four contiguous lane slabs.
    pooled = jnp.maximum(
        jnp.maximum(conv[:, 0 * n_pool:1 * n_pool],
                    conv[:, 1 * n_pool:2 * n_pool]),
        jnp.maximum(conv[:, 2 * n_pool:3 * n_pool],
                    conv[:, 3 * n_pool:4 * n_pool]))      # [Cout, n_pool] f32

    # nn.Dropout() is identity in eval mode.
    # TODO(synk): training-mode dropout (p=0.5) would use pltpu.prng_random_bits.

    # torch.flatten(x, 1) order is (c, oh2, ow2): lay channel rows side by side
    # in a VMEM scratch row (never leaves VMEM).
    for c in range(n_chan_out):
        flat_ref[0:1, c * n_pool:(c + 1) * n_pool] = pooled[c:c + 1, :]

    # Final Linear, fused into the same kernel.
    logits = jnp.dot(flat_ref[...].astype(jnp.bfloat16), wfc_ref[...],
                     preferred_element_type=jnp.float32)  # [1, n_cls] f32
    o_ref[0] = logits + b_ref[...]


# ---------------------------------------------------------------- forward ---

@functools.partial(jax.jit, static_argnames=("kernel_size",))
def cnn_linear_forward(x, w_conv, w_fc, b_fc, *, kernel_size):
    """Forward pass of CNNLinear (eval mode).

    x:      [N, C, H, W]       (NCHW, like the torch module)
    w_conv: [Cout, Cin, KH, KW]
    w_fc:   [F, n_classes]     (already transposed vs torch Linear.weight)
    b_fc:   [1, n_classes]
    """
    n, cin, h, w = x.shape
    cout, cin2, kh, kw = w_conv.shape
    assert cin == cin2 and kh == kernel_size and kw == kernel_size
    oh, ow = h - kh + 1, w - kw + 1
    oh2, ow2 = oh // 2, ow // 2           # MaxPool2d(2) floor behaviour
    n_pool = oh2 * ow2
    ckk = cin * kh * kw
    feat = cout * n_pool
    n_classes = w_fc.shape[1]
    assert w_fc.shape[0] == feat

    # --- im2col in the wrapper (pure layout glue), quadrant-ordered so the
    #     pool is a contiguous-slab max in-kernel.  bf16 halves DMA bytes.
    x_bf = x.astype(jnp.bfloat16)
    views = [x_bf[:, :, i:i + oh, j:j + ow]                 # each [N,C,OH,OW]
             for i in range(kh) for j in range(kw)]
    pat = jnp.stack(views, axis=2)                          # [N,C,KK,OH,OW]
    pat = pat[:, :, :, :2 * oh2, :2 * ow2]                  # floor crop
    pat = pat.reshape(n, cin, kh * kw, oh2, 2, ow2, 2)
    pat = jnp.transpose(pat, (0, 1, 2, 4, 6, 3, 5))         # [..,dh,dw,oh2,ow2]
    patches = pat.reshape(n, ckk, 4 * n_pool)               # [N, CKK, 4*P] bf16

    w_mat = w_conv.reshape(cout, ckk).astype(jnp.bfloat16)  # [Cout, CKK]
    w_fc_bf = w_fc.astype(jnp.bfloat16)                     # [F, n_classes]
    b_fc = b_fc.astype(jnp.float32)

    kernel = functools.partial(_fused_cnn_kernel,
                               n_chan_out=cout, n_pool=n_pool)

    cost = pl.CostEstimate(
        flops=2 * n * (cout * ckk * 4 * n_pool + feat * n_classes),
        transcendentals=0,
        bytes_accessed=(patches.size * 2 + w_mat.size * 2 + w_fc_bf.size * 2
                        + b_fc.size * 4 + n * n_classes * 4),
    )

    out = pl.pallas_call(
        kernel,
        grid=(n,),
        in_specs=[
            pl.BlockSpec((1, ckk, 4 * n_pool), lambda i: (i, 0, 0)),  # patches
            pl.BlockSpec((cout, ckk), lambda i: (0, 0)),              # conv w
            pl.BlockSpec((feat, n_classes), lambda i: (0, 0)),        # fc w
            pl.BlockSpec((1, n_classes), lambda i: (0, 0)),           # fc b
        ],
        out_specs=pl.BlockSpec((1, 1, n_classes), lambda i: (i, 0, 0)),
        out_shape=jax.ShapeDtypeStruct((n, 1, n_classes), jnp.float32),
        scratch_shapes=[pltpu.VMEM((1, feat), jnp.float32)],
        compiler_params=pltpu.CompilerParams(
            dimension_semantics=("parallel",)),
        cost_estimate=cost,
    )(patches, w_mat, w_fc_bf, b_fc)

    return out.reshape(n, n_classes)


# ------------------------------------------------------------------- main ---

if __name__ == "__main__":
    # Shapes consistent with CNNLinear(is_gabornet=False, n_channels=3,
    # kernel_size=5, bias=False, n_classes=10): conv 3->8 k=5, then LazyLinear.
    N, C, H, W = 2, 3, 16, 16
    K = 5
    COUT = N_CHANNELS_OUT
    N_CLASSES = 10
    OH, OW = H - K + 1, W - K + 1           # 12, 12
    OH2, OW2 = OH // 2, OW // 2             # 6, 6
    F_IN = COUT * OH2 * OW2                 # 288 (LazyLinear infers this)

    key = jax.random.PRNGKey(0)
    kx, kw1, kw2, kb2 = jax.random.split(key, 4)
    x = jax.random.normal(kx, (N, C, H, W), jnp.float32)
    w_conv = jax.random.normal(kw1, (COUT, C, K, K), jnp.float32) * 0.1
    w_fc = jax.random.normal(kw2, (F_IN, N_CLASSES), jnp.float32) * 0.05
    b_fc = jax.random.normal(kb2, (1, N_CLASSES), jnp.float32) * 0.01

    out = jax.block_until_ready(
        cnn_linear_forward(x, w_conv, w_fc, b_fc, kernel_size=K))
    assert out.shape == (N, N_CLASSES), out.shape

    # Pure-JAX reference: conv -> relu -> pool -> flatten -> linear.
    def reference(xx, wc, wf, bf):
        conv = lax.conv_general_dilated(
            xx, wc, window_strides=(1, 1), padding="VALID",
            dimension_numbers=("NCHW", "OIHW", "NCHW"),
            preferred_element_type=jnp.float32)
        act = jnp.maximum(conv, 0.0)
        pooled = lax.reduce_window(
            act, -jnp.inf, lax.max,
            window_dimensions=(1, 1, 2, 2), window_strides=(1, 1, 2, 2),
            padding="VALID")
        flat = pooled.reshape(xx.shape[0], -1)
        return jnp.dot(flat.astype(wf.dtype), wf,
                       preferred_element_type=jnp.float32) + bf

    # Tight check: reference using the same bf16 matmul inputs as the kernel.
    ref_bf16 = reference(x.astype(jnp.bfloat16), w_conv.astype(jnp.bfloat16),
                         w_fc.astype(jnp.bfloat16), b_fc)
    assert jnp.allclose(out, ref_bf16, atol=5e-3, rtol=5e-3), \
        float(jnp.max(jnp.abs(out - ref_bf16)))

    # Loose check vs full-f32 reference (bf16 MXU inputs => larger tolerance).
    ref_f32 = reference(x, w_conv, w_fc, b_fc)
    assert jnp.allclose(out, ref_f32, atol=1e-1, rtol=1e-1), \
        float(jnp.max(jnp.abs(out - ref_f32)))

    print("KERNEL_OK")
</pallas_src>

<mosaic_0001>
module attributes {stable_mosaic.version = 11 : i64} {
  func.func @_fused_cnn_kernel(%arg0: i32, %arg1: memref<1x75x144xbf16, #tpu.memory_space<vmem>>, %arg2: memref<8x75xbf16, #tpu.memory_space<vmem>>, %arg3: memref<288x10xbf16, #tpu.memory_space<vmem>>, %arg4: memref<1x10xf32, #tpu.memory_space<vmem>>, %arg5: memref<1x1x10xf32, #tpu.memory_space<vmem>>, %arg6: memref<1x288xf32, #tpu.memory_space<vmem>>) attributes {dimension_semantics = [#tpu.dimension_semantics<parallel>], iteration_bounds = array<i64: 2>, scalar_prefetch = 0 : i64, scratch_operands = 1 : i64, tpu.core_type = #tpu.core_type<tc>, window_params = [{transform_indices = @transform_0, window_bounds = array<i64: 1, 75, 144>}, {pipeline_mode = #tpu.pipeline_mode<synchronous>, transform_indices = @transform_1, window_bounds = array<i64: 8, 75>}, {pipeline_mode = #tpu.pipeline_mode<synchronous>, transform_indices = @transform_2, window_bounds = array<i64: 288, 10>}, {pipeline_mode = #tpu.pipeline_mode<synchronous>, transform_indices = @transform_3, window_bounds = array<i64: 1, 10>}, {transform_indices = @transform_4, window_bounds = array<i64: 1, 1, 10>}]} {
    %c0 = arith.constant 0 : index
    %c0_0 = arith.constant 0 : index
    %0 = vector.load %arg2[%c0, %c0_0] : memref<8x75xbf16, #tpu.memory_space<vmem>>, vector<8x75xbf16>
    %c0_1 = arith.constant 0 : index
    %c0_2 = arith.constant 0 : index
    %c0_3 = arith.constant 0 : index
    %1 = vector.load %arg1[%c0_1, %c0_2, %c0_3] : memref<1x75x144xbf16, #tpu.memory_space<vmem>>, vector<1x75x144xbf16>
    %2 = vector.shape_cast %1 : vector<1x75x144xbf16> to vector<75x144xbf16>
    %cst = arith.constant dense<0.000000e+00> : vector<8x144xf32>
    %3 = tpu.matmul %0, %2, %cst {dimension_numbers = #tpu.dot_dimension_numbers<[1], [0], [0], [1], [0, 0, 1, 1], [], []>} : vector<8x75xbf16>, vector<75x144xbf16>, vector<8x144xf32> -> vector<8x144xf32>
    %cst_4 = arith.constant 0.000000e+00 : f32
    %4 = vector.broadcast %cst_4 : f32 to vector<8x144xf32>
    %5 = arith.maximumf %3, %4 : vector<8x144xf32>
    %6 = vector.extract_strided_slice %5 {offsets = [0, 0], sizes = [8, 36], strides = [1, 1]} : vector<8x144xf32> to vector<8x36xf32>
    %7 = vector.extract_strided_slice %5 {offsets = [0, 36], sizes = [8, 36], strides = [1, 1]} : vector<8x144xf32> to vector<8x36xf32>
    %8 = arith.maximumf %6, %7 : vector<8x36xf32>
    %9 = vector.extract_strided_slice %5 {offsets = [0, 72], sizes = [8, 36], strides = [1, 1]} : vector<8x144xf32> to vector<8x36xf32>
    %10 = vector.extract_strided_slice %5 {offsets = [0, 108], sizes = [8, 36], strides = [1, 1]} : vector<8x144xf32> to vector<8x36xf32>
    %11 = arith.maximumf %9, %10 : vector<8x36xf32>
    %12 = arith.maximumf %8, %11 : vector<8x36xf32>
    %13 = vector.extract_strided_slice %12 {offsets = [0, 0], sizes = [1, 36], strides = [1, 1]} : vector<8x36xf32> to vector<1x36xf32>
    %c0_5 = arith.constant 0 : index
    %c0_6 = arith.constant 0 : index
    %14 = vector.load %arg6[%c0_5, %c0_6] : memref<1x288xf32, #tpu.memory_space<vmem>>, vector<1x36xf32>
    tpu.vector_store %arg6[%c0_5, %c0_6], %13 {strides = array<i32>} : memref<1x288xf32, #tpu.memory_space<vmem>>, vector<1x36xf32>,
    %15 = vector.extract_strided_slice %12 {offsets = [1, 0], sizes = [1, 36], strides = [1, 1]} : vector<8x36xf32> to vector<1x36xf32>
    %c0_7 = arith.constant 0 : index
    %c36 = arith.constant 36 : index
    %16 = vector.load %arg6[%c0_7, %c36] : memref<1x288xf32, #tpu.memory_space<vmem>>, vector<1x36xf32>
    tpu.vector_store %arg6[%c0_7, %c36], %15 {strides = array<i32>} : memref<1x288xf32, #tpu.memory_space<vmem>>, vector<1x36xf32>,
    %17 = vector.extract_strided_slice %12 {offsets = [2, 0], sizes = [1, 36], strides = [1, 1]} : vector<8x36xf32> to vector<1x36xf32>
    %c0_8 = arith.constant 0 : index
    %c72 = arith.constant 72 : index
    %18 = vector.load %arg6[%c0_8, %c72] : memref<1x288xf32, #tpu.memory_space<vmem>>, vector<1x36xf32>
    tpu.vector_store %arg6[%c0_8, %c72], %17 {strides = array<i32>} : memref<1x288xf32, #tpu.memory_space<vmem>>, vector<1x36xf32>,
    %19 = vector.extract_strided_slice %12 {offsets = [3, 0], sizes = [1, 36], strides = [1, 1]} : vector<8x36xf32> to vector<1x36xf32>
    %c0_9 = arith.constant 0 : index
    %c108 = arith.constant 108 : index
    %20 = vector.load %arg6[%c0_9, %c108] : memref<1x288xf32, #tpu.memory_space<vmem>>, vector<1x36xf32>
    tpu.vector_store %arg6[%c0_9, %c108], %19 {strides = array<i32>} : memref<1x288xf32, #tpu.memory_space<vmem>>, vector<1x36xf32>,
    %21 = vector.extract_strided_slice %12 {offsets = [4, 0], sizes = [1, 36], strides = [1, 1]} : vector<8x36xf32> to vector<1x36xf32>
    %c0_10 = arith.constant 0 : index
    %c144 = arith.constant 144 : index
    %22 = vector.load %arg6[%c0_10, %c144] : memref<1x288xf32, #tpu.memory_space<vmem>>, vector<1x36xf32>
    tpu.vector_store %arg6[%c0_10, %c144], %21 {strides = array<i32>} : memref<1x288xf32, #tpu.memory_space<vmem>>, vector<1x36xf32>,
    %23 = vector.extract_strided_slice %12 {offsets = [5, 0], sizes = [1, 36], strides = [1, 1]} : vector<8x36xf32> to vector<1x36xf32>
    %c0_11 = arith.constant 0 : index
    %c180 = arith.constant 180 : index
    %24 = vector.load %arg6[%c0_11, %c180] : memref<1x288xf32, #tpu.memory_space<vmem>>, vector<1x36xf32>
    tpu.vector_store %arg6[%c0_11, %c180], %23 {strides = array<i32>} : memref<1x288xf32, #tpu.memory_space<vmem>>, vector<1x36xf32>,
    %25 = vector.extract_strided_slice %12 {offsets = [6, 0], sizes = [1, 36], strides = [1, 1]} : vector<8x36xf32> to vector<1x36xf32>
    %c0_12 = arith.constant 0 : index
    %c216 = arith.constant 216 : index
    %26 = vector.load %arg6[%c0_12, %c216] : memref<1x288xf32, #tpu.memory_space<vmem>>, vector<1x36xf32>
    tpu.vector_store %arg6[%c0_12, %c216], %25 {strides = array<i32>} : memref<1x288xf32, #tpu.memory_space<vmem>>, vector<1x36xf32>,
    %27 = vector.extract_strided_slice %12 {offsets = [7, 0], sizes = [1, 36], strides = [1, 1]} : vector<8x36xf32> to vector<1x36xf32>
    %c0_13 = arith.constant 0 : index
    %c252 = arith.constant 252 : index
    %28 = vector.load %arg6[%c0_13, %c252] : memref<1x288xf32, #tpu.memory_space<vmem>>, vector<1x36xf32>
    tpu.vector_store %arg6[%c0_13, %c252], %27 {strides = array<i32>} : memref<1x288xf32, #tpu.memory_space<vmem>>, vector<1x36xf32>,
    %c0_14 = arith.constant 0 : index
    %c0_15 = arith.constant 0 : index
    %29 = vector.load %arg6[%c0_14, %c0_15] : memref<1x288xf32, #tpu.memory_space<vmem>>, vector<1x288xf32>
    %30 = arith.truncf %29 : vector<1x288xf32> to vector<1x288xbf16>
    %c0_16 = arith.constant 0 : index
    %c0_17 = arith.constant 0 : index
    %31 = vector.load %arg3[%c0_16, %c0_17] : memref<288x10xbf16, #tpu.memory_space<vmem>>, vector<288x10xbf16>
    %cst_18 = arith.constant dense<0.000000e+00> : vector<1x10xf32>
    %32 = tpu.matmul %30, %31, %cst_18 {dimension_numbers = #tpu.dot_dimension_numbers<[1], [0], [0], [1], [0, 0, 1, 1], [], []>} : vector<1x288xbf16>, vector<288x10xbf16>, vector<1x10xf32> -> vector<1x10xf32>
    %c0_19 = arith.constant 0 : index
    %c0_20 = arith.constant 0 : index
    %33 = vector.load %arg4[%c0_19, %c0_20] : memref<1x10xf32, #tpu.memory_space<vmem>>, vector<1x10xf32>
    %34 = arith.addf %32, %33 : vector<1x10xf32>
    %c0_21 = arith.constant 0 : index
    %c0_22 = arith.constant 0 : index
    %c0_23 = arith.constant 0 : index
    %35 = vector.load %arg5[%c0_21, %c0_22, %c0_23] : memref<1x1x10xf32, #tpu.memory_space<vmem>>, vector<1x1x10xf32>
    %36 = vector.shape_cast %35 : vector<1x1x10xf32> to vector<1x10xf32>
    %37 = vector.shape_cast %34 : vector<1x10xf32> to vector<1x1x10xf32>
    tpu.vector_store %arg5[%c0_21, %c0_22, %c0_23], %37 {strides = array<i32>} : memref<1x1x10xf32, #tpu.memory_space<vmem>>, vector<1x1x10xf32>,
    return
  }
  func.func @transform_0(%arg0: i32) -> (i32, i32, i32) {
    %c0_i32 = arith.constant 0 : i32
    %c0_i32_0 = arith.constant 0 : i32
    %c0_i32_1 = arith.constant 0 : i32
    return %arg0, %c0_i32, %c0_i32_0 : i32, i32, i32
  }
  func.func @transform_1(%arg0: i32) -> (i32, i32) {
    %c0_i32 = arith.constant 0 : i32
    %c0_i32_0 = arith.constant 0 : i32
    %c0_i32_1 = arith.constant 0 : i32
    return %c0_i32, %c0_i32_0 : i32, i32
  }
  func.func @transform_2(%arg0: i32) -> (i32, i32) {
    %c0_i32 = arith.constant 0 : i32
    %c0_i32_0 = arith.constant 0 : i32
    %c0_i32_1 = arith.constant 0 : i32
    return %c0_i32, %c0_i32_0 : i32, i32
  }
  func.func @transform_3(%arg0: i32) -> (i32, i32) {
    %c0_i32 = arith.constant 0 : i32
    %c0_i32_0 = arith.constant 0 : i32
    %c0_i32_1 = arith.constant 0 : i32
    return %c0_i32, %c0_i32_0 : i32, i32
  }
  func.func @transform_4(%arg0: i32) -> (i32, i32, i32) {
    %c0_i32 = arith.constant 0 : i32
    %c0_i32_0 = arith.constant 0 : i32
    %c0_i32_1 = arith.constant 0 : i32
    return %arg0, %c0_i32, %c0_i32_0 : i32, i32, i32
  }
}

</mosaic_0001>

<llo_original>
// kernel: cnn_linear_forward.1
$region0: #{cnn_linear_forward.1}
  #allocation0 [shape = 'u32[]', space=smem, size = 0x4, offset = 0x4, fixed_abs, tag = 'smem constant byte address 0x4 - core index']
  #allocation1 [shape = 'u32[72,128]{1,0:T(1,128)}', space=vmem, size = 0x9000, scoped, tag = 'internal scratch']
  #allocation2 [shape = 'f32[1,288]{1,0:T(1,128)}', space=vmem, size = 0x600, scoped, tag = 'scratch operand']
  %s0 = inlined_call_operand.vmem [shape: bf16[2,75,144], index: 0, kind: input, shape index: {}]
  %s1 = inlined_call_operand.vmem [shape: bf16[8,75], index: 1, kind: input, shape index: {}]
  %s2 = inlined_call_operand.vmem [shape: bf16[288,10], index: 2, kind: input, shape index: {}]
  %s3 = inlined_call_operand.vmem [shape: f32[1,10], index: 3, kind: input, shape index: {}]
  %s4 = inlined_call_operand.hbm [shape: f32[2,1,10], index: 4, kind: output, shape index: {}]
  %s5 = sld [smem:[#allocation0]]
  $region49: #{cnn_linear_forward.1} parent=0
    _
  %s7 = ssub.s32 1, %s5
  %s8 = scalar_select 0, %s7, %s5
  $region1: #{cnn_linear_forward.1} parent=0
    #allocation3 [shape = 'u8[1024]{0}', space=vmem, size = 0x400, scoped, tag = 'output window, operand 0']
    #allocation4 [shape = 's32[2]{0}', space=sflag, size = 0x8, scoped, tag = 'scoped memory for cnn_linear_forward.1']
    %9 = vsyncpa [#allocation4], 0
    %s10 = scalar_lea.sflag [#allocation4], 1
    %11 = vsyncpa %s10, 0
    loop: start=0, step=1, limit=4
    $region2: #{cnn_linear_forward.1} parent=1 // loop_pre_header
      _
    $region3: #{cnn_linear_forward.1} parent=1 // loop_header
      %s13 = sphi 0, %s17
      %p14 = scmp.ge.s32.totalorder %s13, 4
      %s23 = sphi 0, %s25
      %s26 = sphi 0, %s23
      %s27 = sphi 0, %s26
      %s43 = sphi 0, %s27
      %s47 = sphi 0, %s47
      %s49 = sphi 0, %s47
      %s50 = sphi 0, %s49
      %s64 = sphi 0, %s50
      %s68 = sphi 0, %s68
      %s70 = sphi 0, %s68
      %s71 = sphi 0, %s70
      %s85 = sphi 0, %s71
      %s89 = sphi 0, %s89
      %s91 = sphi 0, %s89
      %s92 = sphi 0, %s91
      %s106 = sphi 0, %s92
      %s112 = sphi 0, %s114
      %s115 = sphi 0, %s112
      %s116 = sphi 0, %s115
      %s132 = sphi 0, %s116
    $region4: #{cnn_linear_forward.1} parent=1 // loop_header_branch
      %16 = sbr.rel (%p14) target = $region8
    $region5: #{cnn_linear_forward.1} parent=1 // loop_body
      %s18 = ssub.s32 %s13, 1
      %s19 = ssub.s32 %s13, 2
      %s20 = sadd.s32 %s13, 1
      %s21 = ssub.s32 %s13, %s20
      %p22 = scmp.eq.s32.totalorder %s21, 0
      %s24 = sadd.s32 %s23, 1
      %s25 = scalar_select %p22, %s23, %s24
      %p28 = pneg %p22
      %p29 = scmp.eq.s32.totalorder %s13, 1
      %p30 = por %p28, %p29
      %p31 = scmp.ne.s32.totalorder %s23, %s26
      %p32 = scmp.eq.s32.totalorder %s13, 0
      %p33 = por %p31, %p32
      %p34 = scmp.ne.s32.totalorder %s23, %s26
      %p35 = scmp.eq.s32.totalorder %s18, 1
      %p36 = por %p34, %p35
      %p37 = scmp.ne.s32.totalorder %s26, %s27
      %p38 = scmp.eq.s32.totalorder %s18, 0
      %p39 = por %p37, %p38
      %p40 = scmp.ne.s32.totalorder %s26, %s27
      %p41 = scmp.eq.s32.totalorder %s19, 1
      %p42 = por %p40, %p41
      %p44 = scmp.ne.s32.totalorder %s27, %s43
      %p45 = scmp.eq.s32.totalorder %s19, 0
      %p46 = por %p44, %p45
      %s48 = sadd.s32 %s47, 1
      %p51 = scmp.eq.s32.totalorder %s13, 1
      %p52 = scmp.ne.s32.totalorder %s47, %s49
      %p53 = scmp.eq.s32.totalorder %s13, 0
      %p54 = por %p52, %p53
      %p55 = scmp.ne.s32.totalorder %s47, %s49
      %p56 = scmp.eq.s32.totalorder %s18, 1
      %p57 = por %p55, %p56
      %p58 = scmp.ne.s32.totalorder %s49, %s50
      %p59 = scmp.eq.s32.totalorder %s18, 0
      %p60 = por %p58, %p59
      %p61 = scmp.ne.s32.totalorder %s49, %s50
      %p62 = scmp.eq.s32.totalorder %s19, 1
      %p63 = por %p61, %p62
      %p65 = scmp.ne.s32.totalorder %s50, %s64
      %p66 = scmp.eq.s32.totalorder %s19, 0
      %p67 = por %p65, %p66
      %s69 = sadd.s32 %s68, 1
      %p72 = scmp.eq.s32.totalorder %s13, 1
      %p73 = scmp.ne.s32.totalorder %s68, %s70
      %p74 = scmp.eq.s32.totalorder %s13, 0
      %p75 = por %p73, %p74
      %p76 = scmp.ne.s32.totalorder %s68, %s70
      %p77 = scmp.eq.s32.totalorder %s18, 1
      %p78 = por %p76, %p77
      %p79 = scmp.ne.s32.totalorder %s70, %s71
      %p80 = scmp.eq.s32.totalorder %s18, 0
      %p81 = por %p79, %p80
      %p82 = scmp.ne.s32.totalorder %s70, %s71
      %p83 = scmp.eq.s32.totalorder %s19, 1
      %p84 = por %p82, %p83
      %p86 = scmp.ne.s32.totalorder %s71, %s85
      %p87 = scmp.eq.s32.totalorder %s19, 0
      %p88 = por %p86, %p87
      %s90 = sadd.s32 %s89, 1
      %p93 = scmp.eq.s32.totalorder %s13, 1
      %p94 = scmp.ne.s32.totalorder %s89, %s91
      %p95 = scmp.eq.s32.totalorder %s13, 0
      %p96 = por %p94, %p95
      %p97 = scmp.ne.s32.totalorder %s89, %s91
      %p98 = scmp.eq.s32.totalorder %s18, 1
      %p99 = por %p97, %p98
      %p100 = scmp.ne.s32.totalorder %s91, %s92
      %p101 = scmp.eq.s32.totalorder %s18, 0
      %p102 = por %p100, %p101
      %p103 = scmp.ne.s32.totalorder %s91, %s92
      %p104 = scmp.eq.s32.totalorder %s19, 1
      %p105 = por %p103, %p104
      %p107 = scmp.ne.s32.totalorder %s92, %s106
      %p108 = scmp.eq.s32.totalorder %s19, 0
      %p109 = por %p107, %p108
      %s110 = ssub.s32 %s13, %s20
      %p111 = scmp.eq.s32.totalorder %s110, 0
      %s113 = sadd.s32 %s112, 1
      %s114 = scalar_select %p111, %s112, %s113
      %p117 = pneg %p111
      %p118 = scmp.eq.s32.totalorder %s13, 1
      %p119 = por %p117, %p118
      %p120 = scmp.ne.s32.totalorder %s112, %s115
      %p121 = scmp.eq.s32.totalorder %s13, 0
      %p122 = por %p120, %p121
      %p123 = scmp.ne.s32.totalorder %s112, %s115
      %p124 = scmp.eq.s32.totalorder %s18, 1
      %p125 = por %p123, %p124
      %p126 = scmp.ne.s32.totalorder %s115, %s116
      %p127 = scmp.eq.s32.totalorder %s18, 0
      %p128 = por %p126, %p127
      %p129 = scmp.ne.s32.totalorder %s115, %s116
      %p130 = scmp.eq.s32.totalorder %s19, 1
      %p131 = por %p129, %p130
      %p133 = scmp.ne.s32.totalorder %s116, %s132
      %p134 = scmp.eq.s32.totalorder %s19, 0
      %p135 = por %p133, %p134
      %p136 = scmp.le.s32.totalorder 1, %s13
      %p137 = scmp.lt.s32.totalorder %s13, 3
      %p138 = pnand %p136, %p137
      %p139 = pneg %p138
      // Predicated region
      $region9: #{cnn_linear_forward.1} parent=5 // pred_check
        _
      $region10: #{cnn_linear_forward.1} parent=5 // pred_check_branch
        %141 = sbr.rel (%p138) target = $region12
      $region11: #{cnn_linear_forward.1} parent=5 // pred_region
        %s142 = ssub.s32 %s13, 1
        // Predicated region
        $region13: #{cnn_linear_forward.1} parent=11 // pred_check
          %p143 = pneg %p60
        $region14: #{cnn_linear_forward.1} parent=11 // pred_check_branch
          %145 = sbr.rel (%p143) target = $region16
        $region15: #{cnn_linear_forward.1} parent=11 // pred_region
          _
        $region16: #{cnn_linear_forward.1} parent=11 // pred_fallthru
          _
        // Predicated region
        $region17: #{cnn_linear_forward.1} parent=11 // pred_check
          %p146 = pneg %p81
        $region18: #{cnn_linear_forward.1} parent=11 // pred_check_branch
          %148 = sbr.rel (%p146) target = $region20
        $region19: #{cnn_linear_forward.1} parent=11 // pred_region
          _
        $region20: #{cnn_linear_forward.1} parent=11 // pred_fallthru
          _
        // Predicated region
        $region21: #{cnn_linear_forward.1} parent=11 // pred_check
          %p149 = pneg %p102
        $region22: #{cnn_linear_forward.1} parent=11 // pred_check_branch
          %151 = sbr.rel (%p149) target = $region24
        $region23: #{cnn_linear_forward.1} parent=11 // pred_region
          _
        $region24: #{cnn_linear_forward.1} parent=11 // pred_fallthru
          _
      $region12: #{cnn_linear_forward.1} parent=5 // pred_fallthru
        _
      %p152 = scmp.lt.s32.totalorder %s13, 2
      // Predicated region
      $region25: #{cnn_linear_forward.1} parent=5 // pred_check
        %p153 = pneg %p152
      $region26: #{cnn_linear_forward.1} parent=5 // pred_check_branch
        %155 = sbr.rel (%p153) target = $region28
      $region27: #{cnn_linear_forward.1} parent=5 // pred_region
        // Predicated region
        $region29: #{cnn_linear_forward.1} parent=27 // pred_check
          %p156 = pneg %p33
        $region30: #{cnn_linear_forward.1} parent=27 // pred_check_branch
          %158 = sbr.rel (%p156) target = $region32
        $region31: #{cnn_linear_forward.1} parent=27 // pred_region
          %p159 = scmp.lt.s32.totalorder %s13, 1
          %s160 = scalar_select %p159, %s13, 1
          %s161 = smul.addr %s160, 20
          %s162 = smul.addr %s161, 4
          %s163 = scalar_lea.vmem %s0, %s162
        $region32: #{cnn_linear_forward.1} parent=27 // pred_fallthru
          _
      $region28: #{cnn_linear_forward.1} parent=5 // pred_fallthru
        _
      %p164 = scmp.le.s32.totalorder 1, %s13
      %p165 = scmp.lt.s32.totalorder %s13, 3
      %p166 = pnand %p164, %p165
      %p167 = pneg %p166
      // Predicated region
      $region33: #{cnn_linear_forward.1} parent=5 // pred_check
        _
      $region34: #{cnn_linear_forward.1} parent=5 // pred_check_branch
        %169 = sbr.rel (%p166) target = $region36
      $region35: #{cnn_linear_forward.1} parent=5 // pred_region
        %s170 = ssub.s32 %s13, 1
        %p171 = scmp.lt.s32.totalorder %s18, 1
        %s172 = scalar_select %p171, %s18, 1
        %s173 = smul.addr %s172, 20
        %s174 = smul.addr %s173, 4
        %s175 = scalar_lea.vmem %s0, %s174
        %p176 = pneg %p39
        %p177 = pneg %p36
        %p178 = pneg %p60
        %p179 = pneg %p57
        %p180 = pneg %p81
        %p181 = pneg %p78
        %p182 = pneg %p102
        %p183 = pneg %p99
        %p184 = pneg %p128
        %p185 = pneg %p125
        %s186 = sand.u32 %s115, 1
        %s187 = scalar_lea.sflag [#allocation4], %s186
        %s188 = sand.u32 %s115, 1
        %s189 = scalar_lea.vmem [#allocation3], %s188
        %p190 = scmp.lt.s32.totalorder %s18, 1
        %s191 = scalar_select %p190, %s18, 1
        %s192 = smul.addr %s191, 20
        %s193 = smul.addr %s192, 4
        %s194 = scalar_lea.vmem %s0, %s193
        %v196 = vld [vmem:[%s1] sm:$0xf]
        %v197 = vld [vmem:[%s194] sm:$0xff]
        %v198 = vld [vmem:[%s194 + $0x8] sm:$0xff]
        %v199 = vld [vmem:[%s194 + $0x10] sm:$0xff]
        %v200 = vld [vmem:[%s194 + $0x18] sm:$0xff]
        %v201 = vld [vmem:[%s194 + $0x20] sm:$0xff]
        %v202 = vld [vmem:[%s194 + $0x28] sm:$0xff]
        %v203 = vld [vmem:[%s194 + $0x30] sm:$0xff]
        %v204 = vld [vmem:[%s194 + $0x38] sm:$0xff]
        %v205 = vld [vmem:[%s194 + $0x40] sm:$0xff]
        %v206 = vld [vmem:[%s194 + $0x48] sm:$0x33]
        %v217 = vunpack.c.l.b16 %v197
        %v218 = vunpack.c.h.b16 %v197
        %v219 = vunpack.c.l.b16 %v198
        %v220 = vunpack.c.h.b16 %v198
        %v221 = vunpack.c.l.b16 %v199
        %v222 = vunpack.c.h.b16 %v199
        %v223 = vunpack.c.l.b16 %v200
        %v224 = vunpack.c.h.b16 %v200
        %v225 = vunpack.c.l.b16 %v201
        %v226 = vunpack.c.h.b16 %v201
        %v227 = vunpack.c.l.b16 %v202
        %v228 = vunpack.c.h.b16 %v202
        %v229 = vunpack.c.l.b16 %v203
        %v230 = vunpack.c.h.b16 %v203
        %v231 = vunpack.c.l.b16 %v204
        %v232 = vunpack.c.h.b16 %v204
        %v233 = vunpack.c.l.b16 %v205
        %v234 = vunpack.c.h.b16 %v205
        %v235 = vunpack.c.l.b16 %v206
        %v236 = vunpack.c.h.b16 %v206
        %v237 = vpack.c.b16 %v219, %v217
        %v238 = vpack.c.b16 %v220, %v218
        %v239 = vpack.c.b16 %v223, %v221
        %v240 = vpack.c.b16 %v224, %v222
        %v241 = vpack.c.b16 %v227, %v225
        %v242 = vpack.c.b16 %v228, %v226
        %v243 = vpack.c.b16 %v231, %v229
        %v244 = vpack.c.b16 %v232, %v230
        %v245 = vpack.c.b16 %v235, %v233
        %v246 = vpack.c.b16 %v236, %v234
        %vm255 = vcmask 613376
        %v257 = vsel %vm255, %v196, 0
        %vm259 = vcmask 1044480
        %vm260 = vcmask 1045504
        %v261 = vsel %vm259, 4294967295, 65535
        %v262 = vsel %vm260, %v261, 0
        %v264 = vand.u32 %v245, %v262
        %v267 = vand.u32 %v246, %v262
        %269 = vmatpush.bf16.msra.mxu0 0
        %270 = vmatpush.bf16.msra.mxu0 0
        %271 = vmatpush.bf16.msra.mxu0 0
        %272 = vmatpush.bf16.msra.mxu0 %v264
        %273 = vmatpush.bf16.msra.mxu0 %v243
        %274 = vmatpush.bf16.msra.mxu0 %v241
        %275 = vmatpush.bf16.msra.mxu0 %v239
        %276 = vmatpush.bf16.msra.mxu0 %v237
        %277 = vmatmul.bf16.gmra.mxu0 %v257
        %v278 = vpop.f32.mrf.mxu0
        %v279 = vadd.f32 0.0, %v278
        %v280 = vpop.f32.mrf.mxu0
        %281 = vdwg.mxu0
        %282 = vmatpush.bf16.msra.mxu0 0
        %283 = vmatpush.bf16.msra.mxu0 0
        %284 = vmatpush.bf16.msra.mxu0 0
        %285 = vmatpush.bf16.msra.mxu0 %v267
        %286 = vmatpush.bf16.msra.mxu0 %v244
        %287 = vmatpush.bf16.msra.mxu0 %v242
        %288 = vmatpush.bf16.msra.mxu0 %v240
        %289 = vmatpush.bf16.msra.mxu0 %v238
        %290 = vmatmul.bf16.gmra.mxu0 %v257
        %v291 = vpop.f32.mrf.mxu0
        %v292 = vadd.f32 0.0, %v291
        %v293 = vpop.f32.mrf.mxu0
        %294 = vdwg.mxu0
        %v295 = vmax.f32 %v279, 0.0
        %v296 = vmax.f32 %v292, 0.0
        %298 = vrot.lane.b32.xlu0 %v295, 92
        %v299 = vpop.permute.xlu0 %298
        %v301 = vmax.f32 %v295, %v299
        %303 = vrot.lane.b32.xlu0 %v296, 92
        %v304 = vpop.permute.xlu0 %303
        %vm305 = vcmask 752640
        %v306 = vsel %vm305, %v299, %v304
        %v308 = vmax.f32 %v295, %v306
        %310 = vrot.lane.b32.xlu0 %v308, 56
        %v311 = vpop.permute.xlu0 %310
        %v313 = vmax.f32 %v301, %v311
        %v314 = vlaneseq
        %vm315 = vcmp.ge.s32.totalorder %v314, 0
        %vm316 = vcmp.lt.s32.totalorder %v314, 36
        %vm317 = vmand %vm315, %vm316
        %318 = vst.msk [vmem:[#allocation2] sm:$0x1] %vm317, %v313
        %320 = vst [vmem:[#allocation1] sm:$0xff] %v313
        %s321 = scalar_lea.vmem [#allocation1], 1
        %v322 = vld [vmem:[%s321] ss:$9 sm:$0xff]
        %323 = vrot.lane.b32.xlu0 %v322, 36
        %v324 = vpop.permute.xlu0 %323
        %vm326 = vcmp.ge.s32.totalorder %v314, 36
        %vm327 = vcmp.lt.s32.totalorder %v314, 72
        %vm328 = vmand %vm326, %vm327
        %329 = vst.msk [vmem:[#allocation2] sm:$0x1] %vm328, %v324
        %330 = vst [vmem:[#allocation1] sm:$0xff] %v313
        %s331 = scalar_lea.vmem [#allocation1], 2
        %v332 = vld [vmem:[%s331] ss:$9 sm:$0xff]
        %333 = vrot.lane.b32.xlu0 %v332, 72
        %v334 = vpop.permute.xlu0 %333
        %vm336 = vcmp.ge.s32.totalorder %v314, 72
        %vm337 = vcmp.lt.s32.totalorder %v314, 108
        %vm338 = vmand %vm336, %vm337
        %339 = vst.msk [vmem:[#allocation2] sm:$0x1] %vm338, %v334
        %340 = vst [vmem:[#allocation1] sm:$0xff] %v313
        %s341 = scalar_lea.vmem [#allocation1], 3
        %v342 = vld [vmem:[%s341] ss:$9 sm:$0xff]
        %343 = vrot.lane.b32.xlu0 %v342, 108
        %v344 = vpop.permute.xlu0 %343
        %v345 = vrot.slane %v344, 7
        %vm346 = vcmask 883712
        %v347 = vsel %vm346, %v345, %v344
        %vm349 = vcmp.ge.s32.totalorder %v314, 108
        %vm350 = vcmp.lt.s32.totalorder %v314, 144
        %vm351 = vmand %vm349, %vm350
        %352 = vst.msk [vmem:[#allocation2] sm:$0x3] %vm351, %v347
        %353 = vst [vmem:[#allocation1] sm:$0xff] %v313
        %s354 = scalar_lea.vmem [#allocation1], 4
        %v355 = vld [vmem:[%s354] ss:$9 sm:$0xff]
        %356 = vrot.lane.b32.xlu0 %v355, 16
        %v357 = vpop.permute.xlu0 %356
        %vm359 = vcmp.ge.s32.totalorder %v314, 16
        %vm360 = vcmp.lt.s32.totalorder %v314, 52
        %vm361 = vmand %vm359, %vm360
        %362 = vst.msk [vmem:[#allocation2 + $0x1] sm:$0x1] %vm361, %v357
        %363 = vst [vmem:[#allocation1] sm:$0xff] %v313
        %s364 = scalar_lea.vmem [#allocation1], 5
        %v365 = vld [vmem:[%s364] ss:$9 sm:$0xff]
        %366 = vrot.lane.b32.xlu0 %v365, 52
        %v367 = vpop.permute.xlu0 %366
        %vm369 = vcmp.ge.s32.totalorder %v314, 52
        %vm370 = vcmp.lt.s32.totalorder %v314, 88
        %vm371 = vmand %vm369, %vm370
        %372 = vst.msk [vmem:[#allocation2 + $0x1] sm:$0x1] %vm371, %v367
        %373 = vst [vmem:[#allocation1] sm:$0xff] %v313
        %s374 = scalar_lea.vmem [#allocation1], 6
        %v375 = vld [vmem:[%s374] ss:$9 sm:$0xff]
        %376 = vrot.lane.b32.xlu0 %v375, 88
        %v377 = vpop.permute.xlu0 %376
        %vm379 = vcmp.ge.s32.totalorder %v314, 88
        %vm380 = vcmp.lt.s32.totalorder %v314, 124
        %vm381 = vmand %vm379, %vm380
        %382 = vst.msk [vmem:[#allocation2 + $0x1] sm:$0x1] %vm381, %v377
        %383 = vst [vmem:[#allocation1] sm:$0xff] %v313
        %s384 = scalar_lea.vmem [#allocation1], 7
        %v385 = vld [vmem:[%s384] ss:$9 sm:$0xff]
        %386 = vrot.lane.b32.xlu0 %v385, 124
        %v387 = vpop.permute.xlu0 %386
        %v388 = vrot.slane %v387, 7
        %vm389 = vcmask 1014784
        %v390 = vsel %vm389, %v388, %v387
        %vm392 = vcmp.ge.s32.totalorder %v314, 124
        %vm393 = vcmp.lt.s32.totalorder %v314, 160
        %vm394 = vmand %vm392, %vm393
        %395 = vst.msk [vmem:[#allocation2 + $0x1] sm:$0x3] %vm394, %v390
        %v396 = vld [vmem:[#allocation2] sm:$0x7]
        %v398 = vperm.slane %v396, 0
        %v399 = vperm.slane %v396, 1
        %v400 = vperm.slane %v396, 2
        %v404 = vpack.c.bf16 %v398, %v398
        %v405 = vpack.c.bf16 %v399, %v399
        %v406 = vpack.c.bf16 %v400, %v400
        %v407 = vld [vmem:[%s2] sm:$0xf]
        %v408 = vld [vmem:[%s2 + $0x4] sm:$0xf]
        %v409 = vld [vmem:[%s2 + $0x8] sm:$0xf]
        %v410 = vld [vmem:[%s2 + $0xc] sm:$0xf]
        %v411 = vld [vmem:[%s2 + $0x10] sm:$0xf]
        %v412 = vld [vmem:[%s2 + $0x14] sm:$0xf]
        %v413 = vld [vmem:[%s2 + $0x18] sm:$0xf]
        %v414 = vld [vmem:[%s2 + $0x1c] sm:$0xf]
        %v415 = vld [vmem:[%s2 + $0x20] sm:$0xf]
        %v416 = vld [vmem:[%s2 + $0x24] sm:$0xf]
        %v417 = vld [vmem:[%s2 + $0x28] sm:$0xf]
        %v418 = vld [vmem:[%s2 + $0x2c] sm:$0xf]
        %v419 = vld [vmem:[%s2 + $0x30] sm:$0xf]
        %v420 = vld [vmem:[%s2 + $0x34] sm:$0xf]
        %v421 = vld [vmem:[%s2 + $0x38] sm:$0xf]
        %v422 = vld [vmem:[%s2 + $0x3c] sm:$0xf]
        %v423 = vld [vmem:[%s2 + $0x40] sm:$0xf]
        %v424 = vld [vmem:[%s2 + $0x44] sm:$0xf]
        %v425 = vld [vmem:[%s2 + $0x48] sm:$0xf]
        %v426 = vld [vmem:[%s2 + $0x4c] sm:$0xf]
        %v427 = vld [vmem:[%s2 + $0x50] sm:$0xf]
        %v428 = vld [vmem:[%s2 + $0x54] sm:$0xf]
        %v429 = vld [vmem:[%s2 + $0x58] sm:$0xf]
        %v430 = vld [vmem:[%s2 + $0x5c] sm:$0xf]
        %v431 = vld [vmem:[%s2 + $0x60] sm:$0xf]
        %v432 = vld [vmem:[%s2 + $0x64] sm:$0xf]
        %v433 = vld [vmem:[%s2 + $0x68] sm:$0xf]
        %v434 = vld [vmem:[%s2 + $0x6c] sm:$0xf]
        %v435 = vld [vmem:[%s2 + $0x70] sm:$0xf]
        %v436 = vld [vmem:[%s2 + $0x74] sm:$0xf]
        %v437 = vld [vmem:[%s2 + $0x78] sm:$0xf]
        %v438 = vld [vmem:[%s2 + $0x7c] sm:$0xf]
        %v439 = vld [vmem:[%s2 + $0x80] sm:$0xf]
        %v440 = vld [vmem:[%s2 + $0x84] sm:$0xf]
        %v441 = vld [vmem:[%s2 + $0x88] sm:$0xf]
        %v442 = vld [vmem:[%s2 + $0x8c] sm:$0xf]
        %v443 = vld [vmem:[%s3] sm:$0x1]
        %v480 = vunpack.c.l.b16 %v407
        %v481 = vunpack.c.l.b16 %v408
        %v482 = vunpack.c.l.b16 %v409
        %v483 = vunpack.c.l.b16 %v410
        %v484 = vunpack.c.l.b16 %v411
        %v485 = vunpack.c.l.b16 %v412
        %v486 = vunpack.c.l.b16 %v413
        %v487 = vunpack.c.l.b16 %v414
        %v488 = vunpack.c.l.b16 %v415
        %v489 = vunpack.c.l.b16 %v416
        %v490 = vunpack.c.l.b16 %v417
        %v491 = vunpack.c.l.b16 %v418
        %v492 = vunpack.c.l.b16 %v419
        %v493 = vunpack.c.l.b16 %v420
        %v494 = vunpack.c.l.b16 %v421
        %v495 = vunpack.c.l.b16 %v422
        %v496 = vunpack.c.l.b16 %v423
        %v497 = vunpack.c.l.b16 %v424
        %v498 = vunpack.c.l.b16 %v425
        %v499 = vunpack.c.l.b16 %v426
        %v500 = vunpack.c.l.b16 %v427
        %v501 = vunpack.c.l.b16 %v428
        %v502 = vunpack.c.l.b16 %v429
        %v503 = vunpack.c.l.b16 %v430
        %v504 = vunpack.c.l.b16 %v431
        %v505 = vunpack.c.l.b16 %v432
        %v506 = vunpack.c.l.b16 %v433
        %v507 = vunpack.c.l.b16 %v434
        %v508 = vunpack.c.l.b16 %v435
        %v509 = vunpack.c.l.b16 %v436
        %v510 = vunpack.c.l.b16 %v437
        %v511 = vunpack.c.l.b16 %v438
        %v512 = vunpack.c.l.b16 %v439
        %v513 = vunpack.c.l.b16 %v440
        %v514 = vunpack.c.l.b16 %v441
        %v515 = vunpack.c.l.b16 %v442
        %v516 = vpack.c.b16 %v481, %v480
        %v517 = vpack.c.b16 %v483, %v482
        %v518 = vpack.c.b16 %v485, %v484
        %v519 = vpack.c.b16 %v487, %v486
        %v520 = vpack.c.b16 %v489, %v488
        %v521 = vpack.c.b16 %v491, %v490
        %v522 = vpack.c.b16 %v493, %v492
        %v523 = vpack.c.b16 %v495, %v494
        %v524 = vpack.c.b16 %v497, %v496
        %v525 = vpack.c.b16 %v499, %v498
        %v526 = vpack.c.b16 %v501, %v500
        %v527 = vpack.c.b16 %v503, %v502
        %v528 = vpack.c.b16 %v505, %v504
        %v529 = vpack.c.b16 %v507, %v506
        %v530 = vpack.c.b16 %v509, %v508
        %v531 = vpack.c.b16 %v511, %v510
        %v532 = vpack.c.b16 %v513, %v512
        %v533 = vpack.c.b16 %v515, %v514
        %vm552 = vcmask 261120
        %v554 = vsel %vm552, %v406, 0
        %556 = vmatpush.bf16.msra.mxu0 %v523
        %557 = vmatpush.bf16.msra.mxu0 %v522
        %558 = vmatpush.bf16.msra.mxu0 %v521
        %559 = vmatpush.bf16.msra.mxu0 %v520
        %560 = vmatpush.bf16.msra.mxu0 %v519
        %561 = vmatpush.bf16.msra.mxu0 %v518
        %562 = vmatpush.bf16.msra.mxu0 %v517
        %563 = vmatpush.bf16.msra.mxu0 %v516
        %564 = vmatmul.bf16.gmra.mxu0 %v404
        %v565 = vpop.f32.mrf.mxu0
        %v566 = vadd.f32 %v443, %v565
        %v567 = vpop.f32.mrf.mxu0
        %568 = vdwg.mxu0
        %569 = vmatpush.bf16.msra.mxu0 %v531
        %570 = vmatpush.bf16.msra.mxu0 %v530
        %571 = vmatpush.bf16.msra.mxu0 %v529
        %572 = vmatpush.bf16.msra.mxu0 %v528
        %573 = vmatpush.bf16.msra.mxu0 %v527
        %574 = vmatpush.bf16.msra.mxu0 %v526
        %575 = vmatpush.bf16.msra.mxu0 %v525
        %576 = vmatpush.bf16.msra.mxu0 %v524
        %577 = vmatmul.bf16.gmra.mxu0 %v405
        %v578 = vpop.f32.mrf.mxu0
        %v579 = vadd.f32 %v566, %v578
        %v580 = vpop.f32.mrf.mxu0
        %581 = vdwg.mxu0
        %582 = vmatpush.bf16.msra.mxu0 0
        %583 = vmatpush.bf16.msra.mxu0 0
        %584 = vmatpush.bf16.msra.mxu0 0
        %585 = vmatpush.bf16.msra.mxu0 0
        %586 = vmatpush.bf16.msra.mxu0 0
        %587 = vmatpush.bf16.msra.mxu0 0
        %588 = vmatpush.bf16.msra.mxu0 %v533
        %589 = vmatpush.bf16.msra.mxu0 %v532
        %590 = vmatmul.bf16.gmra.mxu0 %v554
        %v591 = vpop.f32.mrf.mxu0
        %v592 = vadd.f32 %v579, %v591
        %v593 = vpop.f32.mrf.mxu0
        %594 = vdwg.mxu0
        %vm595 = vcmask 73728
        %596 = vst.msk [vmem:[%s189] sm:$0x1] %vm595, %v592
        %s597 = sand.u32 %s115, 1
        %s598 = scalar_lea.sflag [#allocation4], %s597
        %s599 = sand.u32 %s115, 1
        %s600 = scalar_lea.vmem [#allocation3], %s599
        // Predicated region
        $region37: #{cnn_linear_forward.1} parent=35 // pred_check
          %p601 = pneg %p125
        $region38: #{cnn_linear_forward.1} parent=35 // pred_check_branch
          %603 = sbr.rel (%p601) target = $region40
        $region39: #{cnn_linear_forward.1} parent=35 // pred_region
          %605 = vsyncadd %s598, 0
          %s606 = scalar_lea.hbm %s4, %s18
          %s608 = sshll.u32 %s600, 4
          %s609 = int_to_ptr.vmem [resolvable:$true] %s608
          %s610 = sshll.u32 %s606, 4
          %s611 = int_to_ptr.hbm [resolvable:$true] %s610
          %613 = dma.vmem_to_hbm [thread:$0]  %s609, 16, %s611, %s598
        $region40: #{cnn_linear_forward.1} parent=35 // pred_fallthru
          _
      $region36: #{cnn_linear_forward.1} parent=5 // pred_fallthru
        _
      %p614 = scmp.le.s32.totalorder 2, %s13
      // Predicated region
      $region41: #{cnn_linear_forward.1} parent=5 // pred_check
        %p615 = pneg %p614
      $region42: #{cnn_linear_forward.1} parent=5 // pred_check_branch
        %617 = sbr.rel (%p615) target = $region44
      $region43: #{cnn_linear_forward.1} parent=5 // pred_region
        %s618 = ssub.s32 %s13, 2
        // Predicated region
        $region45: #{cnn_linear_forward.1} parent=43 // pred_check
          %p619 = pneg %p131
        $region46: #{cnn_linear_forward.1} parent=43 // pred_check_branch
          %621 = sbr.rel (%p619) target = $region48
        $region47: #{cnn_linear_forward.1} parent=43 // pred_region
          %s622 = sand.u32 %s116, 1
          %s623 = scalar_lea.sflag [#allocation4], %s622
          %s624 = sand.u32 %s116, 1
          %s625 = scalar_lea.vmem [#allocation3], %s624
          %627 = dma.done %s623, 16
        $region48: #{cnn_linear_forward.1} parent=43 // pred_fallthru
          _
      $region44: #{cnn_linear_forward.1} parent=5 // pred_fallthru
        _
    $region6: #{cnn_linear_forward.1} parent=1 // loop_footer
      %s17 = sadd.s32 1, %s13
    $region7: #{cnn_linear_forward.1} parent=1 // loop_footer_branch
      %12 = sbr.rel target = $region3
    $region8: #{cnn_linear_forward.1} parent=1 // loop_exit
      _
    %628 = vsyncpa [#allocation4], 1
    %s629 = scalar_lea.sflag [#allocation4], 1
    %630 = vsyncpa %s629, 1

</llo_original>
